<compile_context>
chip_gen: v7x
topology: tpu7x:2x2x1
jax: 0.10.0
libtpu: 0.0.40
codegen_flags: <defaults>
</compile_context>

<pallas_src>
import math

import jax
import jax.numpy as jnp
from jax.experimental import pallas as pl
from jax.experimental.pallas import tpu as pltpu


# --------------------------------------------------------------------------
# Kernel
# --------------------------------------------------------------------------
def _critic_kernel(s_ref, a_ref,
                   w1_ref, b1_ref,
                   w2a_ref, w2b_ref, b2a_ref, b2b_ref,
                   w3a_ref, w3b_ref, b3_ref,
                   q_ref,
                   x_ref):
    S = s_ref.shape[1]            # state width
    H = w2a_ref.shape[0]          # hidden size (256)

    # ---- pack [state | action] into one VMEM buffer (two lane stores) -----
    # so layer 1 is a single MXU dot instead of two skinny-K dots.
    x_ref[:, :S] = s_ref[...]
    x_ref[:, S:] = a_ref[...]
    x = x_ref[...].astype(jnp.bfloat16)

    # ---- layer 1, fused across both Q-nets: (B, S+A) @ (S+A, 2H) ----------
    h = jnp.dot(x, w1_ref[...], preferred_element_type=jnp.float32) + b1_ref[...]
    h = jnp.maximum(h, 0.0)                                   # f32 ReLU

    # ---- layer 2, per net: (B, H) @ (H, H) ---------------------------------
    hA = h[:, :H].astype(jnp.bfloat16)
    hB = h[:, H:].astype(jnp.bfloat16)
    h2A = jnp.maximum(
        jnp.dot(hA, w2a_ref[...], preferred_element_type=jnp.float32)
        + b2a_ref[...], 0.0)
    h2B = jnp.maximum(
        jnp.dot(hB, w2b_ref[...], preferred_element_type=jnp.float32)
        + b2b_ref[...], 0.0)

    # ---- heads on VPU/XLU: multiply + lane reduce (MXU would waste 126/254
    # of its columns on an N=2 dot) ------------------------------------------
    q1 = jnp.sum(h2A * w3a_ref[...], axis=-1, keepdims=True)   # (B, 1)
    q2 = jnp.sum(h2B * w3b_ref[...], axis=-1, keepdims=True)   # (B, 1)
    q_ref[...] = jnp.concatenate([q1, q2], axis=1) + b3_ref[...]


# --------------------------------------------------------------------------
# Wrapper
# --------------------------------------------------------------------------
def _round_up(x, m):
    return (x + m - 1) // m * m


def _pick_tile_b(B, tile_b):
    """Batch tile choice: large tiles, but >=2 tiles for big batches (v7x 2 TCs)."""
    if B > tile_b:
        return tile_b                       # already >= 2 tiles
    if B >= 512:
        # Split into two tiles so the "parallel" grid axis can shard across
        # v7x's two TensorCores; keep the tile a multiple of 8 sublanes.
        return _round_up(pl.cdiv(B, 2), 8)
    return B                                # small batch: one full-array tile


def critic_forward(state, action, params, tile_b=1024):
    """Pallas implementation of Critic.forward(state, action) -> (q1, q2)."""
    B, S = state.shape
    A = action.shape[1]
    H = params["w2a"].shape[0]

    state = state.astype(jnp.float32)
    action = action.astype(jnp.float32)

    tb = _pick_tile_b(B, tile_b)
    grid_n = pl.cdiv(B, tb)
    Bp = grid_n * tb
    if Bp != B:
        # Zero-pad so every block is full: padded rows flow through the MLP
        # harmlessly and are sliced off below (no garbage reads/writes).
        pad = Bp - B
        state = jnp.pad(state, ((0, pad), (0, 0)))
        action = jnp.pad(action, ((0, pad), (0, 0)))

    vmem = pltpu.MemorySpace.VMEM

    def resident(arr):
        nd = arr.ndim
        return pl.BlockSpec(arr.shape, lambda i, _nd=nd: (0,) * _nd,
                            memory_space=vmem)

    in_specs = [
        pl.BlockSpec((tb, S), lambda i: (i, 0), memory_space=vmem),   # state
        pl.BlockSpec((tb, A), lambda i: (i, 0), memory_space=vmem),   # action
        resident(params["w1"]), resident(params["b1"]),
        resident(params["w2a"]), resident(params["w2b"]),
        resident(params["b2a"]), resident(params["b2b"]),
        resident(params["w3a"]), resident(params["w3b"]),
        resident(params["b3"]),
    ]
    out_spec = pl.BlockSpec((tb, 2), lambda i: (i, 0), memory_space=vmem)

    # Advisory cost so XLA can schedule/overlap this small kernel sensibly.
    flops = 2 * B * ((S + A) * 2 * H + 2 * H * H + 2 * H)
    bytes_params = sum(int(v.size) * v.dtype.itemsize for v in params.values())
    bytes_io = (Bp * (S + A) + Bp * 2) * 4
    cost = pl.CostEstimate(flops=flops, transcendentals=0,
                           bytes_accessed=bytes_params + bytes_io)

    q = pl.pallas_call(
        _critic_kernel,
        out_shape=jax.ShapeDtypeStruct((Bp, 2), jnp.float32),
        grid_spec=pltpu.PrefetchScalarGridSpec(
            num_scalar_prefetch=0,
            grid=(grid_n,),
            in_specs=in_specs,
            out_specs=out_spec,
            scratch_shapes=[pltpu.VMEM((tb, S + A), jnp.float32)],
        ),
        compiler_params=pltpu.CompilerParams(
            dimension_semantics=("parallel",)),   # v7x: shard B-tiles over 2 TCs
        cost_estimate=cost,
    )(state, action,
      params["w1"], params["b1"],
      params["w2a"], params["w2b"], params["b2a"], params["b2b"],
      params["w3a"], params["w3b"], params["b3"])

    q = q[:B]
    return q[:, 0:1], q[:, 1:2]


# --------------------------------------------------------------------------
# Parameter init / packing
# --------------------------------------------------------------------------
def _qnet_params(key, in_dim, hidden):
    """PyTorch nn.Linear default init: uniform(+-1/sqrt(fan_in)); W stored (in,out)."""
    ks = jax.random.split(key, 6)

    def lin(kw, kb, fi, fo):
        bound = 1.0 / math.sqrt(fi)
        w = jax.random.uniform(kw, (fi, fo), jnp.float32, -bound, bound)
        b = jax.random.uniform(kb, (1, fo), jnp.float32, -bound, bound)
        return w, b

    w1, b1 = lin(ks[0], ks[1], in_dim, hidden)
    w2, b2 = lin(ks[2], ks[3], hidden, hidden)
    w3, b3 = lin(ks[4], ks[5], hidden, 1)
    return (w1, b1, w2, b2, w3, b3)


def pack_critic_params(qa, qb):
    """Fuse/pack the two Q-nets' params for the kernel (matmul weights in bf16)."""
    (w1a, b1a, w2a, b2a, w3a, b3a) = qa
    (w1b, b1b, w2b, b2b, w3b, b3b) = qb

    w1 = jnp.concatenate([w1a, w1b], axis=1).astype(jnp.bfloat16)   # (S+A, 2H)
    b1 = jnp.concatenate([b1a, b1b], axis=1).astype(jnp.float32)    # (1, 2H)
    b3 = jnp.concatenate([b3a, b3b], axis=1).astype(jnp.float32)    # (1, 2)

    return dict(
        w1=w1, b1=b1,
        w2a=w2a.astype(jnp.bfloat16), w2b=w2b.astype(jnp.bfloat16),
        b2a=b2a.astype(jnp.float32), b2b=b2b.astype(jnp.float32),
        w3a=w3a.T.astype(jnp.float32),   # (1, H) row for the VPU head
        w3b=w3b.T.astype(jnp.float32),   # (1, H)
        b3=b3,
    )


def init_critic_params(key, state_size, action_size, hidden=256):
    k1, k2 = jax.random.split(key)
    qa = _qnet_params(k1, state_size + action_size, hidden)
    qb = _qnet_params(k2, state_size + action_size, hidden)
    return pack_critic_params(qa, qb), (qa, qb)


# --------------------------------------------------------------------------
# Plain-JAX reference (mirrors the kernel's precision recipe: bf16 weights on
# the two hidden matmuls, f32 accumulation, f32 head) with the original
# unfused twin-net structure -> validates the fusion/packing.
# --------------------------------------------------------------------------
def critic_reference(state, action, raw_params):
    qa, qb = raw_params
    x = jnp.concatenate([state, action], axis=1).astype(jnp.float32)

    def mm(a, w):
        return jnp.dot(a.astype(jnp.bfloat16), w.astype(jnp.bfloat16),
                       preferred_element_type=jnp.float32)

    def qnet(p):
        w1, b1, w2, b2, w3, b3 = p
        h = jnp.maximum(mm(x, w1) + b1, 0.0)
        h = jnp.maximum(mm(h, w2) + b2, 0.0)
        return jnp.dot(h, w3.astype(jnp.float32)) + b3

    return qnet(qa), qnet(qb)


# --------------------------------------------------------------------------
if __name__ == "__main__":
    B, STATE, ACTION = 2, 8, 4

    key = jax.random.PRNGKey(0)
    k_s, k_a, k_p = jax.random.split(key, 3)

    state = jax.random.normal(k_s, (B, STATE), jnp.float32)
    action = jax.random.normal(k_a, (B, ACTION), jnp.float32)
    packed, raw = init_critic_params(k_p, STATE, ACTION)

    fwd = jax.jit(lambda s, a: critic_forward(s, a, packed))
    q1, q2 = fwd(state, action)
    q1 = jax.block_until_ready(q1)
    q2 = jax.block_until_ready(q2)

    q1_ref, q2_ref = critic_reference(state, action, raw)
    assert q1.shape == (B, 1) and q2.shape == (B, 1)
    assert jnp.allclose(q1, q1_ref, atol=2e-3, rtol=2e-3)
    assert jnp.allclose(q2, q2_ref, atol=2e-3, rtol=2e-3)

    print("KERNEL_OK")
</pallas_src>

<mosaic_0001>
module attributes {stable_mosaic.version = 11 : i64} {
  func.func @_critic_kernel(%arg0: i32, %arg1: memref<2x8xf32, #tpu.memory_space<vmem>>, %arg2: memref<2x4xf32, #tpu.memory_space<vmem>>, %arg3: memref<12x512xbf16, #tpu.memory_space<vmem>>, %arg4: memref<1x512xf32, #tpu.memory_space<vmem>>, %arg5: memref<256x256xbf16, #tpu.memory_space<vmem>>, %arg6: memref<256x256xbf16, #tpu.memory_space<vmem>>, %arg7: memref<1x256xf32, #tpu.memory_space<vmem>>, %arg8: memref<1x256xf32, #tpu.memory_space<vmem>>, %arg9: memref<1x256xf32, #tpu.memory_space<vmem>>, %arg10: memref<1x256xf32, #tpu.memory_space<vmem>>, %arg11: memref<1x2xf32, #tpu.memory_space<vmem>>, %arg12: memref<2x2xf32, #tpu.memory_space<vmem>>, %arg13: memref<2x12xf32, #tpu.memory_space<vmem>>) attributes {dimension_semantics = [#tpu.dimension_semantics<parallel>], iteration_bounds = array<i64: 1>, scalar_prefetch = 0 : i64, scratch_operands = 1 : i64, tpu.core_type = #tpu.core_type<tc>, window_params = [{transform_indices = @transform_0, window_bounds = array<i64: 2, 8>}, {transform_indices = @transform_1, window_bounds = array<i64: 2, 4>}, {pipeline_mode = #tpu.pipeline_mode<synchronous>, transform_indices = @transform_2, window_bounds = array<i64: 12, 512>}, {pipeline_mode = #tpu.pipeline_mode<synchronous>, transform_indices = @transform_3, window_bounds = array<i64: 1, 512>}, {pipeline_mode = #tpu.pipeline_mode<synchronous>, transform_indices = @transform_4, window_bounds = array<i64: 256, 256>}, {pipeline_mode = #tpu.pipeline_mode<synchronous>, transform_indices = @transform_5, window_bounds = array<i64: 256, 256>}, {pipeline_mode = #tpu.pipeline_mode<synchronous>, transform_indices = @transform_6, window_bounds = array<i64: 1, 256>}, {pipeline_mode = #tpu.pipeline_mode<synchronous>, transform_indices = @transform_7, window_bounds = array<i64: 1, 256>}, {pipeline_mode = #tpu.pipeline_mode<synchronous>, transform_indices = @transform_8, window_bounds = array<i64: 1, 256>}, {pipeline_mode = #tpu.pipeline_mode<synchronous>, transform_indices = @transform_9, window_bounds = array<i64: 1, 256>}, {pipeline_mode = #tpu.pipeline_mode<synchronous>, transform_indices = @transform_10, window_bounds = array<i64: 1, 2>}, {transform_indices = @transform_11, window_bounds = array<i64: 2, 2>}]} {
    %c0 = arith.constant 0 : index
    %c0_0 = arith.constant 0 : index
    %0 = vector.load %arg1[%c0, %c0_0] : memref<2x8xf32, #tpu.memory_space<vmem>>, vector<2x8xf32>
    %c0_1 = arith.constant 0 : index
    %c0_2 = arith.constant 0 : index
    %1 = vector.load %arg13[%c0_1, %c0_2] : memref<2x12xf32, #tpu.memory_space<vmem>>, vector<2x8xf32>
    tpu.vector_store %arg13[%c0_1, %c0_2], %0 {strides = array<i32>} : memref<2x12xf32, #tpu.memory_space<vmem>>, vector<2x8xf32>,
    %c0_3 = arith.constant 0 : index
    %c0_4 = arith.constant 0 : index
    %2 = vector.load %arg2[%c0_3, %c0_4] : memref<2x4xf32, #tpu.memory_space<vmem>>, vector<2x4xf32>
    %c0_5 = arith.constant 0 : index
    %c8 = arith.constant 8 : index
    %3 = vector.load %arg13[%c0_5, %c8] : memref<2x12xf32, #tpu.memory_space<vmem>>, vector<2x4xf32>
    tpu.vector_store %arg13[%c0_5, %c8], %2 {strides = array<i32>} : memref<2x12xf32, #tpu.memory_space<vmem>>, vector<2x4xf32>,
    %c0_6 = arith.constant 0 : index
    %c0_7 = arith.constant 0 : index
    %4 = vector.load %arg13[%c0_6, %c0_7] : memref<2x12xf32, #tpu.memory_space<vmem>>, vector<2x12xf32>
    %5 = arith.truncf %4 : vector<2x12xf32> to vector<2x12xbf16>
    %c0_8 = arith.constant 0 : index
    %c0_9 = arith.constant 0 : index
    %6 = vector.load %arg3[%c0_8, %c0_9] : memref<12x512xbf16, #tpu.memory_space<vmem>>, vector<12x512xbf16>
    %cst = arith.constant dense<0.000000e+00> : vector<2x512xf32>
    %7 = tpu.matmul %5, %6, %cst {dimension_numbers = #tpu.dot_dimension_numbers<[1], [0], [0], [1], [0, 0, 1, 1], [], []>} : vector<2x12xbf16>, vector<12x512xbf16>, vector<2x512xf32> -> vector<2x512xf32>
    %c0_10 = arith.constant 0 : index
    %c0_11 = arith.constant 0 : index
    %8 = vector.load %arg4[%c0_10, %c0_11] : memref<1x512xf32, #tpu.memory_space<vmem>>, vector<1x512xf32>
    %9 = vector.broadcast %8 : vector<1x512xf32> to vector<2x512xf32>
    %10 = arith.addf %7, %9 : vector<2x512xf32>
    %cst_12 = arith.constant 0.000000e+00 : f32
    %11 = vector.broadcast %cst_12 : f32 to vector<2x512xf32>
    %12 = arith.maximumf %10, %11 : vector<2x512xf32>
    %13 = vector.extract_strided_slice %12 {offsets = [0, 0], sizes = [2, 256], strides = [1, 1]} : vector<2x512xf32> to vector<2x256xf32>
    %14 = arith.truncf %13 : vector<2x256xf32> to vector<2x256xbf16>
    %15 = vector.extract_strided_slice %12 {offsets = [0, 256], sizes = [2, 256], strides = [1, 1]} : vector<2x512xf32> to vector<2x256xf32>
    %16 = arith.truncf %15 : vector<2x256xf32> to vector<2x256xbf16>
    %c0_13 = arith.constant 0 : index
    %c0_14 = arith.constant 0 : index
    %17 = vector.load %arg5[%c0_13, %c0_14] : memref<256x256xbf16, #tpu.memory_space<vmem>>, vector<256x256xbf16>
    %cst_15 = arith.constant dense<0.000000e+00> : vector<2x256xf32>
    %18 = tpu.matmul %14, %17, %cst_15 {dimension_numbers = #tpu.dot_dimension_numbers<[1], [0], [0], [1], [0, 0, 1, 1], [], []>} : vector<2x256xbf16>, vector<256x256xbf16>, vector<2x256xf32> -> vector<2x256xf32>
    %c0_16 = arith.constant 0 : index
    %c0_17 = arith.constant 0 : index
    %19 = vector.load %arg7[%c0_16, %c0_17] : memref<1x256xf32, #tpu.memory_space<vmem>>, vector<1x256xf32>
    %20 = vector.broadcast %19 : vector<1x256xf32> to vector<2x256xf32>
    %21 = arith.addf %18, %20 : vector<2x256xf32>
    %cst_18 = arith.constant 0.000000e+00 : f32
    %22 = vector.broadcast %cst_18 : f32 to vector<2x256xf32>
    %23 = arith.maximumf %21, %22 : vector<2x256xf32>
    %c0_19 = arith.constant 0 : index
    %c0_20 = arith.constant 0 : index
    %24 = vector.load %arg6[%c0_19, %c0_20] : memref<256x256xbf16, #tpu.memory_space<vmem>>, vector<256x256xbf16>
    %cst_21 = arith.constant dense<0.000000e+00> : vector<2x256xf32>
    %25 = tpu.matmul %16, %24, %cst_21 {dimension_numbers = #tpu.dot_dimension_numbers<[1], [0], [0], [1], [0, 0, 1, 1], [], []>} : vector<2x256xbf16>, vector<256x256xbf16>, vector<2x256xf32> -> vector<2x256xf32>
    %c0_22 = arith.constant 0 : index
    %c0_23 = arith.constant 0 : index
    %26 = vector.load %arg8[%c0_22, %c0_23] : memref<1x256xf32, #tpu.memory_space<vmem>>, vector<1x256xf32>
    %27 = vector.broadcast %26 : vector<1x256xf32> to vector<2x256xf32>
    %28 = arith.addf %25, %27 : vector<2x256xf32>
    %cst_24 = arith.constant 0.000000e+00 : f32
    %29 = vector.broadcast %cst_24 : f32 to vector<2x256xf32>
    %30 = arith.maximumf %28, %29 : vector<2x256xf32>
    %c0_25 = arith.constant 0 : index
    %c0_26 = arith.constant 0 : index
    %31 = vector.load %arg9[%c0_25, %c0_26] : memref<1x256xf32, #tpu.memory_space<vmem>>, vector<1x256xf32>
    %32 = vector.broadcast %31 : vector<1x256xf32> to vector<2x256xf32>
    %33 = arith.mulf %23, %32 : vector<2x256xf32>
    %cst_27 = arith.constant dense<0.000000e+00> : vector<2xf32>
    %34 = vector.multi_reduction <add>, %33, %cst_27 [1] : vector<2x256xf32> to vector<2xf32>
    %35 = vector.shape_cast %34 : vector<2xf32> to vector<2x1xf32>
    %c0_28 = arith.constant 0 : index
    %c0_29 = arith.constant 0 : index
    %36 = vector.load %arg10[%c0_28, %c0_29] : memref<1x256xf32, #tpu.memory_space<vmem>>, vector<1x256xf32>
    %37 = vector.broadcast %36 : vector<1x256xf32> to vector<2x256xf32>
    %38 = arith.mulf %30, %37 : vector<2x256xf32>
    %cst_30 = arith.constant dense<0.000000e+00> : vector<2xf32>
    %39 = vector.multi_reduction <add>, %38, %cst_30 [1] : vector<2x256xf32> to vector<2xf32>
    %40 = vector.shape_cast %39 : vector<2xf32> to vector<2x1xf32>
    %41 = tpu.concatenate %35, %40 in 1 : vector<2x1xf32>, vector<2x1xf32> -> vector<2x2xf32>
    %c0_31 = arith.constant 0 : index
    %c0_32 = arith.constant 0 : index
    %42 = vector.load %arg11[%c0_31, %c0_32] : memref<1x2xf32, #tpu.memory_space<vmem>>, vector<1x2xf32>
    %43 = vector.broadcast %42 : vector<1x2xf32> to vector<2x2xf32>
    %44 = arith.addf %41, %43 : vector<2x2xf32>
    %c0_33 = arith.constant 0 : index
    %c0_34 = arith.constant 0 : index
    %45 = vector.load %arg12[%c0_33, %c0_34] : memref<2x2xf32, #tpu.memory_space<vmem>>, vector<2x2xf32>
    tpu.vector_store %arg12[%c0_33, %c0_34], %44 {strides = array<i32>} : memref<2x2xf32, #tpu.memory_space<vmem>>, vector<2x2xf32>,
    return
  }
  func.func @transform_0(%arg0: i32) -> (i32, i32) {
    %c0_i32 = arith.constant 0 : i32
    %c0_i32_0 = arith.constant 0 : i32
    return %arg0, %c0_i32 : i32, i32
  }
  func.func @transform_1(%arg0: i32) -> (i32, i32) {
    %c0_i32 = arith.constant 0 : i32
    %c0_i32_0 = arith.constant 0 : i32
    return %arg0, %c0_i32 : i32, i32
  }
  func.func @transform_2(%arg0: i32) -> (i32, i32) {
    %c0_i32 = arith.constant 0 : i32
    %c0_i32_0 = arith.constant 0 : i32
    %c0_i32_1 = arith.constant 0 : i32
    return %c0_i32, %c0_i32_0 : i32, i32
  }
  func.func @transform_3(%arg0: i32) -> (i32, i32) {
    %c0_i32 = arith.constant 0 : i32
    %c0_i32_0 = arith.constant 0 : i32
    %c0_i32_1 = arith.constant 0 : i32
    return %c0_i32, %c0_i32_0 : i32, i32
  }
  func.func @transform_4(%arg0: i32) -> (i32, i32) {
    %c0_i32 = arith.constant 0 : i32
    %c0_i32_0 = arith.constant 0 : i32
    %c0_i32_1 = arith.constant 0 : i32
    return %c0_i32, %c0_i32_0 : i32, i32
  }
  func.func @transform_5(%arg0: i32) -> (i32, i32) {
    %c0_i32 = arith.constant 0 : i32
    %c0_i32_0 = arith.constant 0 : i32
    %c0_i32_1 = arith.constant 0 : i32
    return %c0_i32, %c0_i32_0 : i32, i32
  }
  func.func @transform_6(%arg0: i32) -> (i32, i32) {
    %c0_i32 = arith.constant 0 : i32
    %c0_i32_0 = arith.constant 0 : i32
    %c0_i32_1 = arith.constant 0 : i32
    return %c0_i32, %c0_i32_0 : i32, i32
  }
  func.func @transform_7(%arg0: i32) -> (i32, i32) {
    %c0_i32 = arith.constant 0 : i32
    %c0_i32_0 = arith.constant 0 : i32
    %c0_i32_1 = arith.constant 0 : i32
    return %c0_i32, %c0_i32_0 : i32, i32
  }
  func.func @transform_8(%arg0: i32) -> (i32, i32) {
    %c0_i32 = arith.constant 0 : i32
    %c0_i32_0 = arith.constant 0 : i32
    %c0_i32_1 = arith.constant 0 : i32
    return %c0_i32, %c0_i32_0 : i32, i32
  }
  func.func @transform_9(%arg0: i32) -> (i32, i32) {
    %c0_i32 = arith.constant 0 : i32
    %c0_i32_0 = arith.constant 0 : i32
    %c0_i32_1 = arith.constant 0 : i32
    return %c0_i32, %c0_i32_0 : i32, i32
  }
  func.func @transform_10(%arg0: i32) -> (i32, i32) {
    %c0_i32 = arith.constant 0 : i32
    %c0_i32_0 = arith.constant 0 : i32
    %c0_i32_1 = arith.constant 0 : i32
    return %c0_i32, %c0_i32_0 : i32, i32
  }
  func.func @transform_11(%arg0: i32) -> (i32, i32) {
    %c0_i32 = arith.constant 0 : i32
    %c0_i32_0 = arith.constant 0 : i32
    return %arg0, %c0_i32 : i32, i32
  }
}

</mosaic_0001>

<llo_original>
// kernel: _lambda_.1
$region0: #{_lambda_.1}
  #allocation0 [shape = 'u32[]', space=smem, size = 0x4, offset = 0x4, fixed_abs, tag = 'smem constant byte address 0x4 - core index']
  #allocation1 [shape = 'u32[144,128]{1,0:T(1,128)}', space=vmem, size = 0x12000, scoped, tag = 'internal scratch']
  #allocation2 [shape = 'f32[2,12]{1,0:T(2,128)}', space=vmem, size = 0x400, scoped, tag = 'scratch operand']
  %s0 = inlined_call_operand.vmem [shape: f32[2,8], index: 0, kind: input, shape index: {}]
  %s1 = inlined_call_operand.vmem [shape: f32[2,4], index: 1, kind: input, shape index: {}]
  %s2 = inlined_call_operand.vmem [shape: bf16[12,512], index: 2, kind: input, shape index: {}]
  %s3 = inlined_call_operand.vmem [shape: f32[1,512], index: 3, kind: input, shape index: {}]
  %s4 = inlined_call_operand.vmem [shape: bf16[256,256], index: 4, kind: input, shape index: {}]
  %s5 = inlined_call_operand.vmem [shape: bf16[256,256], index: 5, kind: input, shape index: {}]
  %s6 = inlined_call_operand.vmem [shape: f32[1,256], index: 6, kind: input, shape index: {}]
  %s7 = inlined_call_operand.vmem [shape: f32[1,256], index: 7, kind: input, shape index: {}]
  %s8 = inlined_call_operand.vmem [shape: f32[1,256], index: 8, kind: input, shape index: {}]
  %s9 = inlined_call_operand.vmem [shape: f32[1,256], index: 9, kind: input, shape index: {}]
  %s10 = inlined_call_operand.vmem [shape: f32[1,2], index: 10, kind: input, shape index: {}]
  %s11 = inlined_call_operand.vmem [shape: f32[2,2], index: 11, kind: output, shape index: {}]
  %s12 = sld [smem:[#allocation0]]
  $region54: #{_lambda_.1} parent=0
    _
  %s14 = ssub.s32 1, %s12
  %s15 = scalar_select 0, %s14, %s12
  // Predicated region
  $region2: #{_lambda_.1} parent=0 // pred_check
    _
  $region3: #{_lambda_.1} parent=0 // pred_check_branch
    %17 = sbr.rel (0) target = $region5
  $region4: #{_lambda_.1} parent=0 // pred_region
    _
  $region5: #{_lambda_.1} parent=0 // pred_fallthru
    _
  // Predicated region
  $region6: #{_lambda_.1} parent=0 // pred_check
    _
  $region7: #{_lambda_.1} parent=0 // pred_check_branch
    %19 = sbr.rel (0) target = $region9
  $region8: #{_lambda_.1} parent=0 // pred_region
    _
  $region9: #{_lambda_.1} parent=0 // pred_fallthru
    _
  // Predicated region
  $region10: #{_lambda_.1} parent=0 // pred_check
    _
  $region11: #{_lambda_.1} parent=0 // pred_check_branch
    %21 = sbr.rel (0) target = $region13
  $region12: #{_lambda_.1} parent=0 // pred_region
    _
  $region13: #{_lambda_.1} parent=0 // pred_fallthru
    _
  // Predicated region
  $region14: #{_lambda_.1} parent=0 // pred_check
    _
  $region15: #{_lambda_.1} parent=0 // pred_check_branch
    %23 = sbr.rel (0) target = $region17
  $region16: #{_lambda_.1} parent=0 // pred_region
    _
  $region17: #{_lambda_.1} parent=0 // pred_fallthru
    _
  // Predicated region
  $region18: #{_lambda_.1} parent=0 // pred_check
    _
  $region19: #{_lambda_.1} parent=0 // pred_check_branch
    %25 = sbr.rel (0) target = $region21
  $region20: #{_lambda_.1} parent=0 // pred_region
    _
  $region21: #{_lambda_.1} parent=0 // pred_fallthru
    _
  // Predicated region
  $region22: #{_lambda_.1} parent=0 // pred_check
    _
  $region23: #{_lambda_.1} parent=0 // pred_check_branch
    %27 = sbr.rel (0) target = $region25
  $region24: #{_lambda_.1} parent=0 // pred_region
    _
  $region25: #{_lambda_.1} parent=0 // pred_fallthru
    _
  // Predicated region
  $region26: #{_lambda_.1} parent=0 // pred_check
    _
  $region27: #{_lambda_.1} parent=0 // pred_check_branch
    %29 = sbr.rel (0) target = $region29
  $region28: #{_lambda_.1} parent=0 // pred_region
    _
  $region29: #{_lambda_.1} parent=0 // pred_fallthru
    _
  // Predicated region
  $region30: #{_lambda_.1} parent=0 // pred_check
    _
  $region31: #{_lambda_.1} parent=0 // pred_check_branch
    %31 = sbr.rel (0) target = $region33
  $region32: #{_lambda_.1} parent=0 // pred_region
    _
  $region33: #{_lambda_.1} parent=0 // pred_fallthru
    _
  // Predicated region
  $region34: #{_lambda_.1} parent=0 // pred_check
    _
  $region35: #{_lambda_.1} parent=0 // pred_check_branch
    %33 = sbr.rel (0) target = $region37
  $region36: #{_lambda_.1} parent=0 // pred_region
    _
  $region37: #{_lambda_.1} parent=0 // pred_fallthru
    _
  // Predicated region
  $region38: #{_lambda_.1} parent=0 // pred_check
    _
  $region39: #{_lambda_.1} parent=0 // pred_check_branch
    %35 = sbr.rel (0) target = $region41
  $region40: #{_lambda_.1} parent=0 // pred_region
    _
  $region41: #{_lambda_.1} parent=0 // pred_fallthru
    _
  // Predicated region
  $region42: #{_lambda_.1} parent=0 // pred_check
    _
  $region43: #{_lambda_.1} parent=0 // pred_check_branch
    %37 = sbr.rel (0) target = $region45
  $region44: #{_lambda_.1} parent=0 // pred_region
    _
  $region45: #{_lambda_.1} parent=0 // pred_fallthru
    _
  %v39 = vld [vmem:[%s0] sm:$0x3]
  %vm40 = vcmask 58368
  %41 = vst.msk [vmem:[#allocation2] sm:$0x3] %vm40, %v39
  %v42 = vld [vmem:[%s1] sm:$0x3]
  %44 = vrot.lane.b32.xlu0 %v42, 8
  %v45 = vpop.permute.xlu0 %44
  %vm47 = vcmask 91200
  %48 = vst.msk [vmem:[#allocation2] sm:$0x3] %vm47, %v45
  %v49 = vld [vmem:[#allocation2] sm:$0x3]
  %v50 = vpack.c.bf16 %v49, %v49
  %v51 = vld [vmem:[%s2] sm:$0xff]
  %v52 = vld [vmem:[%s2 + $0x8] sm:$0xff]
  %v53 = vld [vmem:[%s2 + $0x10] sm:$0x33]
  %v54 = vld [vmem:[%s2 + $0x18] sm:$0x33]
  %v55 = vld [vmem:[%s3] sm:$0xf]
  %v57 = vlaneseq
  %v58 = vshrl.u32 %v57, 7
  %v59 = vsub.s32 0, %v58
  %v60 = vrot.slane %v55, %v59
  %v61 = vlaneseq
  %v62 = vshrl.u32 %v61, 7
  %v63 = vsub.s32 1, %v62
  %v64 = vrot.slane %v55, %v63
  %v65 = vlaneseq
  %v66 = vshrl.u32 %v65, 7
  %v67 = vsub.s32 2, %v66
  %v68 = vrot.slane %v55, %v67
  %v69 = vlaneseq
  %v70 = vshrl.u32 %v69, 7
  %v71 = vsub.s32 3, %v70
  %v72 = vrot.slane %v55, %v71
  %v81 = vunpack.c.l.b16 %v51
  %v82 = vunpack.c.h.b16 %v51
  %v83 = vunpack.c.l.b16 %v52
  %v84 = vunpack.c.h.b16 %v52
  %v85 = vunpack.c.l.b16 %v53
  %v86 = vunpack.c.h.b16 %v53
  %v87 = vunpack.c.l.b16 %v54
  %v88 = vunpack.c.h.b16 %v54
  %v89 = vpack.c.b16 %v85, %v81
  %v90 = vpack.c.b16 %v86, %v82
  %v91 = vpack.c.b16 %v87, %v83
  %v92 = vpack.c.b16 %v88, %v84
  %vm93 = vcmask 97280
  %v95 = vsel %vm93, %v50, 0
  %vm97 = vcmask 1045504
  %v99 = vsel %vm97, %v89, 0
  %v102 = vsel %vm97, %v90, 0
  %v105 = vsel %vm97, %v91, 0
  %v108 = vsel %vm97, %v92, 0
  %110 = vmatprep.subr.bf16.mxu0 %v102
  %111 = vmatpush1.bf16.msra.mxu0 %v99
  %112 = vmatprep.subr.bf16.mxu0 0
  %113 = vmatpush1.bf16.msra.mxu0 0
  %114 = vmatprep.subr.bf16.mxu0 0
  %115 = vmatpush1.bf16.msra.mxu0 0
  %116 = vmatprep.subr.bf16.mxu0 0
  %117 = vmatpush1.bf16.msra.mxu0 0
  %118 = vmatprep.subr.bf16.mxu0 0
  %119 = vmatpush1.bf16.msra.mxu0 0
  %120 = vmatprep.subr.bf16.mxu0 0
  %121 = vmatpush1.bf16.msra.mxu0 0
  %122 = vmatprep.subr.bf16.mxu0 0
  %123 = vmatpush1.bf16.msra.mxu0 0
  %124 = vmatprep.subr.bf16.mxu0 0
  %125 = vmatpush1.bf16.msra.mxu0 0
  %126 = vmatprep.subr.bf16.mxu0 0
  %127 = vmatpush1.bf16.msra.mxu0 0
  %128 = vmatprep.subr.bf16.mxu0 0
  %129 = vmatpush1.bf16.msra.mxu0 0
  %130 = vmatprep.subr.bf16.mxu0 0
  %131 = vmatpush1.bf16.msra.mxu0 0
  %132 = vmatprep.subr.bf16.mxu0 0
  %133 = vmatpush1.bf16.msra.mxu0 0
  %134 = vmatprep.subr.bf16.mxu0 0
  %135 = vmatpush1.bf16.msra.mxu0 0
  %136 = vmatprep.subr.bf16.mxu0 0
  %137 = vmatpush1.bf16.msra.mxu0 0
  %138 = vmatprep.subr.bf16.mxu0 0
  %139 = vmatpush1.bf16.msra.mxu0 0
  %140 = vmatprep.subr.bf16.mxu0 0
  %141 = vmatpush1.bf16.msra.mxu0 0
  %142 = vmatprep.mubr.bf16.mxu0 0
  %143 = vmatmul.mubr.bf16.gmra.mrb[0].mxu0 %v95
  %v144 = vpop.f32.mrb[0].mxu0
  %v145 = vadd.f32 %v60, %v144
  %v146 = vpop.f32.mrb[0].mxu0
  %v147 = vadd.f32 %v64, %v146
  %v148 = vpop.f32.mrb[0].mxu0
  %v149 = vpop.f32.mrb[0].mxu0
  %150 = vdwg.mxu0
  %151 = vmatprep.subr.bf16.mxu0 %v108
  %152 = vmatpush1.bf16.msra.mxu0 %v105
  %153 = vmatprep.subr.bf16.mxu0 0
  %154 = vmatpush1.bf16.msra.mxu0 0
  %155 = vmatprep.subr.bf16.mxu0 0
  %156 = vmatpush1.bf16.msra.mxu0 0
  %157 = vmatprep.subr.bf16.mxu0 0
  %158 = vmatpush1.bf16.msra.mxu0 0
  %159 = vmatprep.subr.bf16.mxu0 0
  %160 = vmatpush1.bf16.msra.mxu0 0
  %161 = vmatprep.subr.bf16.mxu0 0
  %162 = vmatpush1.bf16.msra.mxu0 0
  %163 = vmatprep.subr.bf16.mxu0 0
  %164 = vmatpush1.bf16.msra.mxu0 0
  %165 = vmatprep.subr.bf16.mxu0 0
  %166 = vmatpush1.bf16.msra.mxu0 0
  %167 = vmatprep.subr.bf16.mxu0 0
  %168 = vmatpush1.bf16.msra.mxu0 0
  %169 = vmatprep.subr.bf16.mxu0 0
  %170 = vmatpush1.bf16.msra.mxu0 0
  %171 = vmatprep.subr.bf16.mxu0 0
  %172 = vmatpush1.bf16.msra.mxu0 0
  %173 = vmatprep.subr.bf16.mxu0 0
  %174 = vmatpush1.bf16.msra.mxu0 0
  %175 = vmatprep.subr.bf16.mxu0 0
  %176 = vmatpush1.bf16.msra.mxu0 0
  %177 = vmatprep.subr.bf16.mxu0 0
  %178 = vmatpush1.bf16.msra.mxu0 0
  %179 = vmatprep.subr.bf16.mxu0 0
  %180 = vmatpush1.bf16.msra.mxu0 0
  %181 = vmatprep.subr.bf16.mxu0 0
  %182 = vmatpush1.bf16.msra.mxu0 0
  %183 = vmatprep.mubr.bf16.mxu0 0
  %184 = vmatmul.mubr.bf16.gmra.mrb[0].mxu0 %v95
  %v185 = vpop.f32.mrb[0].mxu0
  %v186 = vadd.f32 %v68, %v185
  %v187 = vpop.f32.mrb[0].mxu0
  %v188 = vadd.f32 %v72, %v187
  %v189 = vpop.f32.mrb[0].mxu0
  %v190 = vpop.f32.mrb[0].mxu0
  %191 = vdwg.mxu0
  %v192 = vmax.f32 %v145, 0.0
  %v193 = vmax.f32 %v147, 0.0
  %v194 = vmax.f32 %v186, 0.0
  %v195 = vmax.f32 %v188, 0.0
  %v196 = vpack.c.bf16 %v192, %v192
  %v197 = vpack.c.bf16 %v193, %v193
  %v198 = vpack.c.bf16 %v194, %v194
  %v199 = vpack.c.bf16 %v195, %v195
  %v200 = vld [vmem:[%s4] sm:$0xff]
  %v201 = vld [vmem:[%s4 + $0x8] sm:$0xff]
  %v202 = vld [vmem:[%s4 + $0x10] sm:$0xff]
  %v203 = vld [vmem:[%s4 + $0x18] sm:$0xff]
  %v204 = vld [vmem:[%s4 + $0x20] sm:$0xff]
  %v205 = vld [vmem:[%s4 + $0x28] sm:$0xff]
  %v206 = vld [vmem:[%s4 + $0x30] sm:$0xff]
  %v207 = vld [vmem:[%s4 + $0x38] sm:$0xff]
  %v208 = vld [vmem:[%s4 + $0x40] sm:$0xff]
  %v209 = vld [vmem:[%s4 + $0x48] sm:$0xff]
  %v210 = vld [vmem:[%s4 + $0x50] sm:$0xff]
  %v211 = vld [vmem:[%s4 + $0x58] sm:$0xff]
  %v212 = vld [vmem:[%s4 + $0x60] sm:$0xff]
  %v213 = vld [vmem:[%s4 + $0x68] sm:$0xff]
  %v214 = vld [vmem:[%s4 + $0x70] sm:$0xff]
  %v215 = vld [vmem:[%s4 + $0x78] sm:$0xff]
  %v216 = vld [vmem:[%s4 + $0x80] sm:$0xff]
  %v217 = vld [vmem:[%s4 + $0x88] sm:$0xff]
  %v218 = vld [vmem:[%s4 + $0x90] sm:$0xff]
  %v219 = vld [vmem:[%s4 + $0x98] sm:$0xff]
  %v220 = vld [vmem:[%s4 + $0xa0] sm:$0xff]
  %v221 = vld [vmem:[%s4 + $0xa8] sm:$0xff]
  %v222 = vld [vmem:[%s4 + $0xb0] sm:$0xff]
  %v223 = vld [vmem:[%s4 + $0xb8] sm:$0xff]
  %v224 = vld [vmem:[%s4 + $0xc0] sm:$0xff]
  %v225 = vld [vmem:[%s4 + $0xc8] sm:$0xff]
  %v226 = vld [vmem:[%s4 + $0xd0] sm:$0xff]
  %v227 = vld [vmem:[%s4 + $0xd8] sm:$0xff]
  %v228 = vld [vmem:[%s4 + $0xe0] sm:$0xff]
  %v229 = vld [vmem:[%s4 + $0xe8] sm:$0xff]
  %v230 = vld [vmem:[%s4 + $0xf0] sm:$0xff]
  %v231 = vld [vmem:[%s4 + $0xf8] sm:$0xff]
  %v232 = vld [vmem:[%s6] sm:$0x3]
  %v234 = vlaneseq
  %v235 = vshrl.u32 %v234, 7
  %v236 = vsub.s32 0, %v235
  %v237 = vrot.slane %v232, %v236
  %v238 = vlaneseq
  %v239 = vshrl.u32 %v238, 7
  %v240 = vsub.s32 1, %v239
  %v241 = vrot.slane %v232, %v240
  %v276 = vunpack.c.l.b16 %v200
  %v277 = vunpack.c.h.b16 %v200
  %v278 = vunpack.c.l.b16 %v201
  %v279 = vunpack.c.h.b16 %v201
  %v280 = vunpack.c.l.b16 %v202
  %v281 = vunpack.c.h.b16 %v202
  %v282 = vunpack.c.l.b16 %v203
  %v283 = vunpack.c.h.b16 %v203
  %v284 = vunpack.c.l.b16 %v204
  %v285 = vunpack.c.h.b16 %v204
  %v286 = vunpack.c.l.b16 %v205
  %v287 = vunpack.c.h.b16 %v205
  %v288 = vunpack.c.l.b16 %v206
  %v289 = vunpack.c.h.b16 %v206
  %v290 = vunpack.c.l.b16 %v207
  %v291 = vunpack.c.h.b16 %v207
  %v292 = vunpack.c.l.b16 %v208
  %v293 = vunpack.c.h.b16 %v208
  %v294 = vunpack.c.l.b16 %v209
  %v295 = vunpack.c.h.b16 %v209
  %v296 = vunpack.c.l.b16 %v210
  %v297 = vunpack.c.h.b16 %v210
  %v298 = vunpack.c.l.b16 %v211
  %v299 = vunpack.c.h.b16 %v211
  %v300 = vunpack.c.l.b16 %v212
  %v301 = vunpack.c.h.b16 %v212
  %v302 = vunpack.c.l.b16 %v213
  %v303 = vunpack.c.h.b16 %v213
  %v304 = vunpack.c.l.b16 %v214
  %v305 = vunpack.c.h.b16 %v214
  %v306 = vunpack.c.l.b16 %v215
  %v307 = vunpack.c.h.b16 %v215
  %v308 = vunpack.c.l.b16 %v216
  %v309 = vunpack.c.h.b16 %v216
  %v310 = vunpack.c.l.b16 %v217
  %v311 = vunpack.c.h.b16 %v217
  %v312 = vunpack.c.l.b16 %v218
  %v313 = vunpack.c.h.b16 %v218
  %v314 = vunpack.c.l.b16 %v219
  %v315 = vunpack.c.h.b16 %v219
  %v316 = vunpack.c.l.b16 %v220
  %v317 = vunpack.c.h.b16 %v220
  %v318 = vunpack.c.l.b16 %v221
  %v319 = vunpack.c.h.b16 %v221
  %v320 = vunpack.c.l.b16 %v222
  %v321 = vunpack.c.h.b16 %v222
  %v322 = vunpack.c.l.b16 %v223
  %v323 = vunpack.c.h.b16 %v223
  %v324 = vunpack.c.l.b16 %v224
  %v325 = vunpack.c.h.b16 %v224
  %v326 = vunpack.c.l.b16 %v225
  %v327 = vunpack.c.h.b16 %v225
  %v328 = vunpack.c.l.b16 %v226
  %v329 = vunpack.c.h.b16 %v226
  %v330 = vunpack.c.l.b16 %v227
  %v331 = vunpack.c.h.b16 %v227
  %v332 = vunpack.c.l.b16 %v228
  %v333 = vunpack.c.h.b16 %v228
  %v334 = vunpack.c.l.b16 %v229
  %v335 = vunpack.c.h.b16 %v229
  %v336 = vunpack.c.l.b16 %v230
  %v337 = vunpack.c.h.b16 %v230
  %v338 = vunpack.c.l.b16 %v231
  %v339 = vunpack.c.h.b16 %v231
  %v340 = vpack.c.b16 %v278, %v276
  %v341 = vpack.c.b16 %v279, %v277
  %v342 = vpack.c.b16 %v282, %v280
  %v343 = vpack.c.b16 %v283, %v281
  %v344 = vpack.c.b16 %v286, %v284
  %v345 = vpack.c.b16 %v287, %v285
  %v346 = vpack.c.b16 %v290, %v288
  %v347 = vpack.c.b16 %v291, %v289
  %v348 = vpack.c.b16 %v294, %v292
  %v349 = vpack.c.b16 %v295, %v293
  %v350 = vpack.c.b16 %v298, %v296
  %v351 = vpack.c.b16 %v299, %v297
  %v352 = vpack.c.b16 %v302, %v300
  %v353 = vpack.c.b16 %v303, %v301
  %v354 = vpack.c.b16 %v306, %v304
  %v355 = vpack.c.b16 %v307, %v305
  %v356 = vpack.c.b16 %v310, %v308
  %v357 = vpack.c.b16 %v311, %v309
  %v358 = vpack.c.b16 %v314, %v312
  %v359 = vpack.c.b16 %v315, %v313
  %v360 = vpack.c.b16 %v318, %v316
  %v361 = vpack.c.b16 %v319, %v317
  %v362 = vpack.c.b16 %v322, %v320
  %v363 = vpack.c.b16 %v323, %v321
  %v364 = vpack.c.b16 %v326, %v324
  %v365 = vpack.c.b16 %v327, %v325
  %v366 = vpack.c.b16 %v330, %v328
  %v367 = vpack.c.b16 %v331, %v329
  %v368 = vpack.c.b16 %v334, %v332
  %v369 = vpack.c.b16 %v335, %v333
  %v370 = vpack.c.b16 %v338, %v336
  %v371 = vpack.c.b16 %v339, %v337
  %404 = vmatprep.subr.bf16.mxu0 %v341
  %405 = vmatpush1.bf16.msra.mxu0 %v340
  %406 = vmatprep.subr.bf16.mxu0 %v343
  %407 = vmatpush1.bf16.msra.mxu0 %v342
  %408 = vmatprep.subr.bf16.mxu0 %v345
  %409 = vmatpush1.bf16.msra.mxu0 %v344
  %410 = vmatprep.subr.bf16.mxu0 %v347
  %411 = vmatpush1.bf16.msra.mxu0 %v346
  %412 = vmatprep.subr.bf16.mxu0 %v349
  %413 = vmatpush1.bf16.msra.mxu0 %v348
  %414 = vmatprep.subr.bf16.mxu0 %v351
  %415 = vmatpush1.bf16.msra.mxu0 %v350
  %416 = vmatprep.subr.bf16.mxu0 %v353
  %417 = vmatpush1.bf16.msra.mxu0 %v352
  %418 = vmatprep.subr.bf16.mxu0 %v355
  %419 = vmatpush1.bf16.msra.mxu0 %v354
  %420 = vmatprep.subr.bf16.mxu0 %v357
  %421 = vmatpush1.bf16.msra.mxu0 %v356
  %422 = vmatprep.subr.bf16.mxu0 %v359
  %423 = vmatpush1.bf16.msra.mxu0 %v358
  %424 = vmatprep.subr.bf16.mxu0 %v361
  %425 = vmatpush1.bf16.msra.mxu0 %v360
  %426 = vmatprep.subr.bf16.mxu0 %v363
  %427 = vmatpush1.bf16.msra.mxu0 %v362
  %428 = vmatprep.subr.bf16.mxu0 %v365
  %429 = vmatpush1.bf16.msra.mxu0 %v364
  %430 = vmatprep.subr.bf16.mxu0 %v367
  %431 = vmatpush1.bf16.msra.mxu0 %v366
  %432 = vmatprep.subr.bf16.mxu0 %v369
  %433 = vmatpush1.bf16.msra.mxu0 %v368
  %434 = vmatprep.subr.bf16.mxu0 %v371
  %435 = vmatpush1.bf16.msra.mxu0 %v370
  %436 = vmatprep.mubr.bf16.mxu0 %v197
  %437 = vmatmul.mubr.bf16.gmra.mrb[0].mxu0 %v196
  %v438 = vpop.f32.mrb[0].mxu0
  %v439 = vadd.f32 %v237, %v438
  %v440 = vpop.f32.mrb[0].mxu0
  %v441 = vadd.f32 %v241, %v440
  %v442 = vpop.f32.mrb[0].mxu0
  %v443 = vpop.f32.mrb[0].mxu0
  %444 = vdwg.mxu0
  %v445 = vmax.f32 %v439, 0.0
  %v446 = vmax.f32 %v441, 0.0
  %v447 = vld [vmem:[%s5] sm:$0xff]
  %v448 = vld [vmem:[%s5 + $0x8] sm:$0xff]
  %v449 = vld [vmem:[%s5 + $0x10] sm:$0xff]
  %v450 = vld [vmem:[%s5 + $0x18] sm:$0xff]
  %v451 = vld [vmem:[%s5 + $0x20] sm:$0xff]
  %v452 = vld [vmem:[%s5 + $0x28] sm:$0xff]
  %v453 = vld [vmem:[%s5 + $0x30] sm:$0xff]
  %v454 = vld [vmem:[%s5 + $0x38] sm:$0xff]
  %v455 = vld [vmem:[%s5 + $0x40] sm:$0xff]
  %v456 = vld [vmem:[%s5 + $0x48] sm:$0xff]
  %v457 = vld [vmem:[%s5 + $0x50] sm:$0xff]
  %v458 = vld [vmem:[%s5 + $0x58] sm:$0xff]
  %v459 = vld [vmem:[%s5 + $0x60] sm:$0xff]
  %v460 = vld [vmem:[%s5 + $0x68] sm:$0xff]
  %v461 = vld [vmem:[%s5 + $0x70] sm:$0xff]
  %v462 = vld [vmem:[%s5 + $0x78] sm:$0xff]
  %v463 = vld [vmem:[%s5 + $0x80] sm:$0xff]
  %v464 = vld [vmem:[%s5 + $0x88] sm:$0xff]
  %v465 = vld [vmem:[%s5 + $0x90] sm:$0xff]
  %v466 = vld [vmem:[%s5 + $0x98] sm:$0xff]
  %v467 = vld [vmem:[%s5 + $0xa0] sm:$0xff]
  %v468 = vld [vmem:[%s5 + $0xa8] sm:$0xff]
  %v469 = vld [vmem:[%s5 + $0xb0] sm:$0xff]
  %v470 = vld [vmem:[%s5 + $0xb8] sm:$0xff]
  %v471 = vld [vmem:[%s5 + $0xc0] sm:$0xff]
  %v472 = vld [vmem:[%s5 + $0xc8] sm:$0xff]
  %v473 = vld [vmem:[%s5 + $0xd0] sm:$0xff]
  %v474 = vld [vmem:[%s5 + $0xd8] sm:$0xff]
  %v475 = vld [vmem:[%s5 + $0xe0] sm:$0xff]
  %v476 = vld [vmem:[%s5 + $0xe8] sm:$0xff]
  %v477 = vld [vmem:[%s5 + $0xf0] sm:$0xff]
  %v478 = vld [vmem:[%s5 + $0xf8] sm:$0xff]
  %v479 = vld [vmem:[%s7] sm:$0x3]
  %v481 = vlaneseq
  %v482 = vshrl.u32 %v481, 7
  %v483 = vsub.s32 0, %v482
  %v484 = vrot.slane %v479, %v483
  %v485 = vlaneseq
  %v486 = vshrl.u32 %v485, 7
  %v487 = vsub.s32 1, %v486
  %v488 = vrot.slane %v479, %v487
  %v523 = vunpack.c.l.b16 %v447
  %v524 = vunpack.c.h.b16 %v447
  %v525 = vunpack.c.l.b16 %v448
  %v526 = vunpack.c.h.b16 %v448
  %v527 = vunpack.c.l.b16 %v449
  %v528 = vunpack.c.h.b16 %v449
  %v529 = vunpack.c.l.b16 %v450
  %v530 = vunpack.c.h.b16 %v450
  %v531 = vunpack.c.l.b16 %v451
  %v532 = vunpack.c.h.b16 %v451
  %v533 = vunpack.c.l.b16 %v452
  %v534 = vunpack.c.h.b16 %v452
  %v535 = vunpack.c.l.b16 %v453
  %v536 = vunpack.c.h.b16 %v453
  %v537 = vunpack.c.l.b16 %v454
  %v538 = vunpack.c.h.b16 %v454
  %v539 = vunpack.c.l.b16 %v455
  %v540 = vunpack.c.h.b16 %v455
  %v541 = vunpack.c.l.b16 %v456
  %v542 = vunpack.c.h.b16 %v456
  %v543 = vunpack.c.l.b16 %v457
  %v544 = vunpack.c.h.b16 %v457
  %v545 = vunpack.c.l.b16 %v458
  %v546 = vunpack.c.h.b16 %v458
  %v547 = vunpack.c.l.b16 %v459
  %v548 = vunpack.c.h.b16 %v459
  %v549 = vunpack.c.l.b16 %v460
  %v550 = vunpack.c.h.b16 %v460
  %v551 = vunpack.c.l.b16 %v461
  %v552 = vunpack.c.h.b16 %v461
  %v553 = vunpack.c.l.b16 %v462
  %v554 = vunpack.c.h.b16 %v462
  %v555 = vunpack.c.l.b16 %v463
  %v556 = vunpack.c.h.b16 %v463
  %v557 = vunpack.c.l.b16 %v464
  %v558 = vunpack.c.h.b16 %v464
  %v559 = vunpack.c.l.b16 %v465
  %v560 = vunpack.c.h.b16 %v465
  %v561 = vunpack.c.l.b16 %v466
  %v562 = vunpack.c.h.b16 %v466
  %v563 = vunpack.c.l.b16 %v467
  %v564 = vunpack.c.h.b16 %v467
  %v565 = vunpack.c.l.b16 %v468
  %v566 = vunpack.c.h.b16 %v468
  %v567 = vunpack.c.l.b16 %v469
  %v568 = vunpack.c.h.b16 %v469
  %v569 = vunpack.c.l.b16 %v470
  %v570 = vunpack.c.h.b16 %v470
  %v571 = vunpack.c.l.b16 %v471
  %v572 = vunpack.c.h.b16 %v471
  %v573 = vunpack.c.l.b16 %v472
  %v574 = vunpack.c.h.b16 %v472
  %v575 = vunpack.c.l.b16 %v473
  %v576 = vunpack.c.h.b16 %v473
  %v577 = vunpack.c.l.b16 %v474
  %v578 = vunpack.c.h.b16 %v474
  %v579 = vunpack.c.l.b16 %v475
  %v580 = vunpack.c.h.b16 %v475
  %v581 = vunpack.c.l.b16 %v476
  %v582 = vunpack.c.h.b16 %v476
  %v583 = vunpack.c.l.b16 %v477
  %v584 = vunpack.c.h.b16 %v477
  %v585 = vunpack.c.l.b16 %v478
  %v586 = vunpack.c.h.b16 %v478
  %v587 = vpack.c.b16 %v525, %v523
  %v588 = vpack.c.b16 %v526, %v524
  %v589 = vpack.c.b16 %v529, %v527
  %v590 = vpack.c.b16 %v530, %v528
  %v591 = vpack.c.b16 %v533, %v531
  %v592 = vpack.c.b16 %v534, %v532
  %v593 = vpack.c.b16 %v537, %v535
  %v594 = vpack.c.b16 %v538, %v536
  %v595 = vpack.c.b16 %v541, %v539
  %v596 = vpack.c.b16 %v542, %v540
  %v597 = vpack.c.b16 %v545, %v543
  %v598 = vpack.c.b16 %v546, %v544
  %v599 = vpack.c.b16 %v549, %v547
  %v600 = vpack.c.b16 %v550, %v548
  %v601 = vpack.c.b16 %v553, %v551
  %v602 = vpack.c.b16 %v554, %v552
  %v603 = vpack.c.b16 %v557, %v555
  %v604 = vpack.c.b16 %v558, %v556
  %v605 = vpack.c.b16 %v561, %v559
  %v606 = vpack.c.b16 %v562, %v560
  %v607 = vpack.c.b16 %v565, %v563
  %v608 = vpack.c.b16 %v566, %v564
  %v609 = vpack.c.b16 %v569, %v567
  %v610 = vpack.c.b16 %v570, %v568
  %v611 = vpack.c.b16 %v573, %v571
  %v612 = vpack.c.b16 %v574, %v572
  %v613 = vpack.c.b16 %v577, %v575
  %v614 = vpack.c.b16 %v578, %v576
  %v615 = vpack.c.b16 %v581, %v579
  %v616 = vpack.c.b16 %v582, %v580
  %v617 = vpack.c.b16 %v585, %v583
  %v618 = vpack.c.b16 %v586, %v584
  %651 = vmatprep.subr.bf16.mxu0 %v588
  %652 = vmatpush1.bf16.msra.mxu0 %v587
  %653 = vmatprep.subr.bf16.mxu0 %v590
  %654 = vmatpush1.bf16.msra.mxu0 %v589
  %655 = vmatprep.subr.bf16.mxu0 %v592
  %656 = vmatpush1.bf16.msra.mxu0 %v591
  %657 = vmatprep.subr.bf16.mxu0 %v594
  %658 = vmatpush1.bf16.msra.mxu0 %v593
  %659 = vmatprep.subr.bf16.mxu0 %v596
  %660 = vmatpush1.bf16.msra.mxu0 %v595
  %661 = vmatprep.subr.bf16.mxu0 %v598
  %662 = vmatpush1.bf16.msra.mxu0 %v597
  %663 = vmatprep.subr.bf16.mxu0 %v600
  %664 = vmatpush1.bf16.msra.mxu0 %v599
  %665 = vmatprep.subr.bf16.mxu0 %v602
  %666 = vmatpush1.bf16.msra.mxu0 %v601
  %667 = vmatprep.subr.bf16.mxu0 %v604
  %668 = vmatpush1.bf16.msra.mxu0 %v603
  %669 = vmatprep.subr.bf16.mxu0 %v606
  %670 = vmatpush1.bf16.msra.mxu0 %v605
  %671 = vmatprep.subr.bf16.mxu0 %v608
  %672 = vmatpush1.bf16.msra.mxu0 %v607
  %673 = vmatprep.subr.bf16.mxu0 %v610
  %674 = vmatpush1.bf16.msra.mxu0 %v609
  %675 = vmatprep.subr.bf16.mxu0 %v612
  %676 = vmatpush1.bf16.msra.mxu0 %v611
  %677 = vmatprep.subr.bf16.mxu0 %v614
  %678 = vmatpush1.bf16.msra.mxu0 %v613
  %679 = vmatprep.subr.bf16.mxu0 %v616
  %680 = vmatpush1.bf16.msra.mxu0 %v615
  %681 = vmatprep.subr.bf16.mxu0 %v618
  %682 = vmatpush1.bf16.msra.mxu0 %v617
  %683 = vmatprep.mubr.bf16.mxu0 %v199
  %684 = vmatmul.mubr.bf16.gmra.mrb[0].mxu0 %v198
  %v685 = vpop.f32.mrb[0].mxu0
  %v686 = vadd.f32 %v484, %v685
  %v687 = vpop.f32.mrb[0].mxu0
  %v688 = vadd.f32 %v488, %v687
  %v689 = vpop.f32.mrb[0].mxu0
  %v690 = vpop.f32.mrb[0].mxu0
  %691 = vdwg.mxu0
  %v692 = vmax.f32 %v686, 0.0
  %v693 = vmax.f32 %v688, 0.0
  %v694 = vld [vmem:[%s8] sm:$0x3]
  %v696 = vlaneseq
  %v697 = vshrl.u32 %v696, 7
  %v698 = vsub.s32 0, %v697
  %v699 = vrot.slane %v694, %v698
  %v700 = vlaneseq
  %v701 = vshrl.u32 %v700, 7
  %v702 = vsub.s32 1, %v701
  %v703 = vrot.slane %v694, %v702
  %v706 = vmul.f32 %v445, %v699
  %v707 = vmul.f32 %v446, %v703
  %vm708 = vcmask 1041408
  %v709 = vsel %vm708, %v706, 0.0
  %v710 = vsel %vm708, %v707, 0.0
  %v711 = vadd.f32 %v709, %v710
  %712 = vadd.xlane.f32.xlu0 %v711
  %v713 = vpop.xlane.xlu0 %712
  %v714 = vld [vmem:[%s9] sm:$0x3]
  %v716 = vlaneseq
  %v717 = vshrl.u32 %v716, 7
  %v718 = vsub.s32 0, %v717
  %v719 = vrot.slane %v714, %v718
  %v720 = vlaneseq
  %v721 = vshrl.u32 %v720, 7
  %v722 = vsub.s32 1, %v721
  %v723 = vrot.slane %v714, %v722
  %v726 = vmul.f32 %v692, %v719
  %v727 = vmul.f32 %v693, %v723
  %v728 = vsel %vm708, %v726, 0.0
  %v729 = vsel %vm708, %v727, 0.0
  %v730 = vadd.f32 %v728, %v729
  %731 = vadd.xlane.f32.xlu0 %v730
  %v732 = vpop.xlane.xlu0 %731
  %vm733 = vcmask 7168
  %v734 = vsel %vm733, %v713, %v732
  %v735 = vld [vmem:[%s10] sm:$0x1]
  %v737 = vlaneseq
  %v738 = vshrl.u32 %v737, 7
  %v739 = vsub.s32 0, %v738
  %v740 = vrot.slane %v735, %v739
  %v742 = vadd.f32 %v734, %v740
  %vm743 = vcmask 9216
  %744 = vst.msk [vmem:[%s11] sm:$0x3] %vm743, %v742
  // Predicated region
  $region46: #{_lambda_.1} parent=0 // pred_check
    _
  $region47: #{_lambda_.1} parent=0 // pred_check_branch
    %746 = sbr.rel (0) target = $region49
  $region48: #{_lambda_.1} parent=0 // pred_region
    _
  $region49: #{_lambda_.1} parent=0 // pred_fallthru
    _
  // Predicated region
  $region50: #{_lambda_.1} parent=0 // pred_check
    _
  $region51: #{_lambda_.1} parent=0 // pred_check_branch
    %748 = sbr.rel (0) target = $region53
  $region52: #{_lambda_.1} parent=0 // pred_region
    _
  $region53: #{_lambda_.1} parent=0 // pred_fallthru
    _

</llo_original>
